<compile_context>
chip_gen: v7x
topology: tpu7x:2x2x1
jax: 0.10.0
libtpu: 0.0.40
codegen_flags: <defaults>
</compile_context>

<pallas_src>
import jax
import jax.numpy as jnp
from jax.experimental import pallas as pl
from jax.experimental.pallas import tpu as pltpu

KERNEL_SIZES = [2, 4, 6]
STRIDE = 2


def _cross_embed_kernel(a_ref, w_ref, b_ref, o_ref):
    """One fused im2col GEMM tile (all conv branches) + bias add.

    a_ref: (tm, K) bf16, w_ref: (K, tcout) bf16, b_ref: (1, tcout) f32,
    o_ref: (tm, tcout) f32.  MXU accumulates in f32.
    """
    acc = jnp.dot(a_ref[...], w_ref[...], preferred_element_type=jnp.float32)
    o_ref[...] = (acc + b_ref[...]).astype(o_ref.dtype)


def _im2col(x_nhwc, k, stride, pad):
    """Extract conv patches; flatten rows in (kh, kw, cin) order."""
    n, h, w, c = x_nhwc.shape
    xp = jnp.pad(x_nhwc, ((0, 0), (pad, pad), (pad, pad), (0, 0)))
    ho = (h + 2 * pad - k) // stride + 1
    wo = (w + 2 * pad - k) // stride + 1
    cols = []
    for kh in range(k):
        for kw in range(k):
            cols.append(xp[:, kh:kh + stride * ho:stride,
                           kw:kw + stride * wo:stride, :])
    cols = jnp.stack(cols, axis=3)                      # (N, Ho, Wo, k*k, Cin)
    return cols.reshape(n * ho * wo, k * k * c), ho, wo


def _fuse_weights(params, cin, kmax):
    """Zero-embed each branch's OIHW weights into the centered kmax x kmax grid
    and concatenate along Cout; flatten in (kh, kw, cin) order to match the
    im2col row layout.  (pad=(k-stride)//2 centers every window, so k=2/k=4
    patches are center crops of the k=6 patch.)"""
    w_cols, b_cols = [], []
    for (w_oihw, b), k in zip(params, sorted(KERNEL_SIZES)):
        off = (kmax - k) // 2
        cout_i = w_oihw.shape[0]
        w_pad = jnp.zeros((cout_i, cin, kmax, kmax), w_oihw.dtype)
        w_pad = w_pad.at[:, :, off:off + k, off:off + k].set(w_oihw)
        w_cols.append(
            jnp.transpose(w_pad, (2, 3, 1, 0)).reshape(kmax * kmax * cin, cout_i))
        b_cols.append(b)
    return jnp.concatenate(w_cols, axis=-1), jnp.concatenate(b_cols, axis=-1)


def _vmem_budget_bytes():
    """~75% of this generation's physical VMEM (v5e/v6e: ~96 MiB, v7x: 48 MiB);
    conservative 48 MiB fallback if the hardware query is unavailable."""
    try:
        cap = int(pltpu.get_tpu_info().vmem_capacity_bytes)
    except Exception:
        cap = 64 * 1024 * 1024
    return max(32 * 1024 * 1024, (cap * 3) // 4)


def _choose_tiles(m, kdim, cout128, budget):
    """Pick (tile_m, tile_cout) against the per-generation VMEM budget.

    The resident fused weight is budgeted as double-buffered so the plan stays
    valid even when single-buffering (pl.Buffered(1)) is unavailable.
    """
    a_b, w_b, o_b = 2, 2, 4                             # bf16 A/W, f32 out
    # Cout tile: keep the (possibly double-buffered) resident W + bias within
    # ~half the budget; tile Cout on a 128-lane grid if it does not fit.
    # TODO(synk): for very large Cin (K slab itself too big) add a K grid axis
    # with an f32 VMEM accumulator and pl.when init/finalize.
    max_tcout = (budget // 2) // max(1, 2 * kdim * w_b)
    max_tcout = max(128, (max_tcout // 128) * 128)
    tcout = min(cout128, max_tcout)
    n_j = -(-cout128 // tcout)
    cout_pad = n_j * tcout
    resident = 2 * (kdim * tcout * w_b + tcout * 4)
    # M tile: double-buffered A + out tiles plus f32 accumulate headroom/row.
    per_row = 2 * kdim * a_b + 2 * tcout * o_b + tcout * 4
    avail = max(budget - resident, per_row * 16)
    tm = max(16, min(2048, (avail // per_row // 16) * 16))
    # Keep >= ~8 grid steps along M (megacore sharding + pipeline overlap).
    cap_tm = max(16, ((-(-m // 8)) + 15) // 16 * 16)
    tm = min(tm, cap_tm)
    return tm, tcout, cout_pad, n_j


def cross_embed_forward(x_nchw, params):
    """params: list of (weight OIHW, bias) per kernel size (sorted ascending)."""
    n, cin, h, w = x_nchw.shape
    kmax = max(KERNEL_SIZES)
    pad = (kmax - STRIDE) // 2

    # NHWC + bf16 before im2col so the materialized patch matrix is half-width.
    x = jnp.transpose(x_nchw, (0, 2, 3, 1)).astype(jnp.bfloat16)
    a, ho, wo = _im2col(x, kmax, STRIDE, pad)           # (M, 36*Cin) bf16
    m, kdim = a.shape

    w_fused, b_fused = _fuse_weights(params, cin, kmax)  # f32
    dim_out = w_fused.shape[1]
    cout128 = -(-dim_out // 128) * 128                   # lane-dense output

    budget = _vmem_budget_bytes()
    tm, tcout, cout_pad, n_j = _choose_tiles(m, kdim, cout128, budget)

    w_fused = jnp.pad(
        w_fused, ((0, 0), (0, cout_pad - dim_out))).astype(jnp.bfloat16)
    b_fused = jnp.pad(
        b_fused, (0, cout_pad - dim_out)).reshape(1, cout_pad).astype(jnp.float32)

    m_pad = -(-m // tm) * tm
    if m_pad != m:
        a = jnp.pad(a, ((0, m_pad - m), (0, 0)))

    grid = (m_pad // tm, n_j)

    def run(single_buffer_resident):
        # Grid-invariant operands (n_j == 1) only need one VMEM buffer.
        res_mode = (dict(pipeline_mode=pl.Buffered(1))
                    if single_buffer_resident else {})
        return pl.pallas_call(
            _cross_embed_kernel,
            out_shape=jax.ShapeDtypeStruct((m_pad, cout_pad), jnp.float32),
            grid_spec=pltpu.PrefetchScalarGridSpec(
                num_scalar_prefetch=0,
                grid=grid,
                in_specs=[
                    # A: streamed along i; revisited (no re-DMA) across inner j.
                    pl.BlockSpec((tm, kdim), lambda i, j: (i, 0)),
                    # fused W / bias: resident along i, tiled along j.
                    pl.BlockSpec((kdim, tcout), lambda i, j: (0, j), **res_mode),
                    pl.BlockSpec((1, tcout), lambda i, j: (0, j), **res_mode),
                ],
                out_specs=pl.BlockSpec((tm, tcout), lambda i, j: (i, j)),
            ),
            compiler_params=pltpu.CompilerParams(
                dimension_semantics=("parallel", "arbitrary"),
                vmem_limit_bytes=int(budget)),
            cost_estimate=pl.CostEstimate(
                flops=2 * m_pad * kdim * cout_pad,
                transcendentals=0,
                bytes_accessed=(2 * m_pad * kdim + 2 * kdim * cout_pad
                                + 4 * cout_pad + 4 * m_pad * cout_pad)),
        )(a, w_fused, b_fused)

    try:
        out = run(single_buffer_resident=(n_j == 1))
    except Exception:
        # pipeline_mode / Buffered(1) unavailable in this jax build: fall back
        # to default double-buffered resident operands (already budgeted).
        out = run(single_buffer_resident=False)

    out = out[:m, :dim_out]
    # Back to NCHW (matches torch.cat(dim=1) over the conv outputs).
    # TODO(synk): keep NHWC / (M, dim_out) when the consumer allows it to save
    # the extra HBM pass of this transpose.
    return out.reshape(n, ho, wo, dim_out).transpose(0, 3, 1, 2)


def reference_forward(x_nchw, params):
    """Pure-JAX reference (lax conv, full f32) replicating the PyTorch forward."""
    outs = []
    for (wgt, b), k in zip(params, sorted(KERNEL_SIZES)):
        pad = (k - STRIDE) // 2
        o = jax.lax.conv_general_dilated(
            x_nchw, wgt, (STRIDE, STRIDE), [(pad, pad), (pad, pad)],
            dimension_numbers=("NCHW", "OIHW", "NCHW"),
            precision=jax.lax.Precision.HIGHEST)
        outs.append(o + b.reshape(1, -1, 1, 1))
    return jnp.concatenate(outs, axis=1)


if __name__ == "__main__":
    key = jax.random.PRNGKey(0)
    N, Cin, H, W = 2, 4, 16, 16
    dim_out = 8

    # dim_scales exactly as in the PyTorch __init__
    ks_sorted = sorted(KERNEL_SIZES)
    num_scales = len(ks_sorted)
    dim_scales = [int(dim_out / 2 ** i) for i in range(1, num_scales)]
    dim_scales = [*dim_scales, dim_out - sum(dim_scales)]     # [4, 2, 2]

    keys = jax.random.split(key, 1 + 2 * num_scales)
    x = jax.random.normal(keys[0], (N, Cin, H, W), jnp.float32)

    # deterministic, PyTorch-Conv2d-style uniform init (no checkpoint loading)
    params = []
    for i, (k, cout) in enumerate(zip(ks_sorted, dim_scales)):
        wkey, bkey = keys[1 + 2 * i], keys[2 + 2 * i]
        fan_in = Cin * k * k
        bound = 1.0 / (fan_in ** 0.5)
        wgt = jax.random.uniform(wkey, (cout, Cin, k, k), jnp.float32, -bound, bound)
        bias = jax.random.uniform(bkey, (cout,), jnp.float32, -bound, bound)
        params.append((wgt, bias))

    out = cross_embed_forward(x, params)
    jax.block_until_ready(out)
    assert out.shape == (N, dim_out, H // 2, W // 2), out.shape

    # Tight check: f32 reference on bf16-quantized inputs/weights (isolates the
    # kernel's accumulation from the deliberate bf16 input quantization).
    x_q = x.astype(jnp.bfloat16).astype(jnp.float32)
    params_q = [(wgt.astype(jnp.bfloat16).astype(jnp.float32), b)
                for (wgt, b) in params]
    ref_q = reference_forward(x_q, params_q)
    err_q = float(jnp.max(jnp.abs(out - ref_q)))
    assert jnp.allclose(out, ref_q, atol=2e-3, rtol=2e-3), err_q

    # Loose check against the full-f32 reference (bf16 quantization tolerance).
    ref = reference_forward(x, params)
    err = float(jnp.max(jnp.abs(out - ref)))
    assert jnp.allclose(out, ref, atol=5e-2, rtol=5e-2), err

    print("KERNEL_OK")
</pallas_src>

<mosaic_0001>
module attributes {stable_mosaic.version = 11 : i64} {
  func.func @_cross_embed_kernel(%arg0: i32, %arg1: i32, %arg2: memref<16x144xbf16, #tpu.memory_space<vmem>>, %arg3: memref<144x128xbf16, #tpu.memory_space<vmem>>, %arg4: memref<1x128xf32, #tpu.memory_space<vmem>>, %arg5: memref<16x128xf32, #tpu.memory_space<vmem>>) attributes {dimension_semantics = [#tpu.dimension_semantics<parallel>, #tpu.dimension_semantics<arbitrary>], iteration_bounds = array<i64: 8, 1>, scalar_prefetch = 0 : i64, scratch_operands = 0 : i64, tpu.core_type = #tpu.core_type<tc>, window_params = [{transform_indices = @transform_0, window_bounds = array<i64: 16, 144>}, {pipeline_mode = #tpu.pipeline_mode<synchronous>, transform_indices = @transform_1, window_bounds = array<i64: 144, 128>}, {pipeline_mode = #tpu.pipeline_mode<synchronous>, transform_indices = @transform_2, window_bounds = array<i64: 1, 128>}, {transform_indices = @transform_3, window_bounds = array<i64: 16, 128>}]} {
    %c0 = arith.constant 0 : index
    %c0_0 = arith.constant 0 : index
    %0 = vector.load %arg2[%c0, %c0_0] : memref<16x144xbf16, #tpu.memory_space<vmem>>, vector<16x144xbf16>
    %c0_1 = arith.constant 0 : index
    %c0_2 = arith.constant 0 : index
    %1 = vector.load %arg3[%c0_1, %c0_2] : memref<144x128xbf16, #tpu.memory_space<vmem>>, vector<144x128xbf16>
    %cst = arith.constant dense<0.000000e+00> : vector<16x128xf32>
    %2 = tpu.matmul %0, %1, %cst {dimension_numbers = #tpu.dot_dimension_numbers<[1], [0], [0], [1], [0, 0, 1, 1], [], []>} : vector<16x144xbf16>, vector<144x128xbf16>, vector<16x128xf32> -> vector<16x128xf32>
    %c0_3 = arith.constant 0 : index
    %c0_4 = arith.constant 0 : index
    %3 = vector.load %arg4[%c0_3, %c0_4] : memref<1x128xf32, #tpu.memory_space<vmem>>, vector<1x128xf32>
    %4 = vector.broadcast %3 : vector<1x128xf32> to vector<16x128xf32>
    %5 = arith.addf %2, %4 : vector<16x128xf32>
    %c0_5 = arith.constant 0 : index
    %c0_6 = arith.constant 0 : index
    %6 = vector.load %arg5[%c0_5, %c0_6] : memref<16x128xf32, #tpu.memory_space<vmem>>, vector<16x128xf32>
    tpu.vector_store %arg5[%c0_5, %c0_6], %5 {strides = array<i32>} : memref<16x128xf32, #tpu.memory_space<vmem>>, vector<16x128xf32>,
    return
  }
  func.func @transform_0(%arg0: i32, %arg1: i32) -> (i32, i32) {
    %c0_i32 = arith.constant 0 : i32
    %c0_i32_0 = arith.constant 0 : i32
    return %arg0, %c0_i32 : i32, i32
  }
  func.func @transform_1(%arg0: i32, %arg1: i32) -> (i32, i32) {
    %c0_i32 = arith.constant 0 : i32
    %c0_i32_0 = arith.constant 0 : i32
    return %c0_i32, %arg1 : i32, i32
  }
  func.func @transform_2(%arg0: i32, %arg1: i32) -> (i32, i32) {
    %c0_i32 = arith.constant 0 : i32
    %c0_i32_0 = arith.constant 0 : i32
    return %c0_i32, %arg1 : i32, i32
  }
  func.func @transform_3(%arg0: i32, %arg1: i32) -> (i32, i32) {
    %c0_i32 = arith.constant 0 : i32
    return %arg0, %arg1 : i32, i32
  }
}

module attributes {stable_mosaic.version = 11 : i64} {
  func.func @_cross_embed_kernel(%arg0: i32, %arg1: i32, %arg2: memref<16x144xbf16, #tpu.memory_space<vmem>>, %arg3: memref<144x128xbf16, #tpu.memory_space<vmem>>, %arg4: memref<1x128xf32, #tpu.memory_space<vmem>>, %arg5: memref<16x128xf32, #tpu.memory_space<vmem>>) attributes {dimension_semantics = [#tpu.dimension_semantics<parallel>, #tpu.dimension_semantics<arbitrary>], iteration_bounds = array<i64: 8, 1>, scalar_prefetch = 0 : i64, scratch_operands = 0 : i64, tpu.core_type = #tpu.core_type<tc>, window_params = [{transform_indices = @transform_0, window_bounds = array<i64: 16, 144>}, {transform_indices = @transform_1, window_bounds = array<i64: 144, 128>}, {transform_indices = @transform_2, window_bounds = array<i64: 1, 128>}, {transform_indices = @transform_3, window_bounds = array<i64: 16, 128>}]} {
    %c0 = arith.constant 0 : index
    %c0_0 = arith.constant 0 : index
    %0 = vector.load %arg2[%c0, %c0_0] : memref<16x144xbf16, #tpu.memory_space<vmem>>, vector<16x144xbf16>
    %c0_1 = arith.constant 0 : index
    %c0_2 = arith.constant 0 : index
    %1 = vector.load %arg3[%c0_1, %c0_2] : memref<144x128xbf16, #tpu.memory_space<vmem>>, vector<144x128xbf16>
    %cst = arith.constant dense<0.000000e+00> : vector<16x128xf32>
    %2 = tpu.matmul %0, %1, %cst {dimension_numbers = #tpu.dot_dimension_numbers<[1], [0], [0], [1], [0, 0, 1, 1], [], []>} : vector<16x144xbf16>, vector<144x128xbf16>, vector<16x128xf32> -> vector<16x128xf32>
    %c0_3 = arith.constant 0 : index
    %c0_4 = arith.constant 0 : index
    %3 = vector.load %arg4[%c0_3, %c0_4] : memref<1x128xf32, #tpu.memory_space<vmem>>, vector<1x128xf32>
    %4 = vector.broadcast %3 : vector<1x128xf32> to vector<16x128xf32>
    %5 = arith.addf %2, %4 : vector<16x128xf32>
    %c0_5 = arith.constant 0 : index
    %c0_6 = arith.constant 0 : index
    %6 = vector.load %arg5[%c0_5, %c0_6] : memref<16x128xf32, #tpu.memory_space<vmem>>, vector<16x128xf32>
    tpu.vector_store %arg5[%c0_5, %c0_6], %5 {strides = array<i32>} : memref<16x128xf32, #tpu.memory_space<vmem>>, vector<16x128xf32>,
    return
  }
  func.func @transform_0(%arg0: i32, %arg1: i32) -> (i32, i32) {
    %c0_i32 = arith.constant 0 : i32
    %c0_i32_0 = arith.constant 0 : i32
    return %arg0, %c0_i32 : i32, i32
  }
  func.func @transform_1(%arg0: i32, %arg1: i32) -> (i32, i32) {
    %c0_i32 = arith.constant 0 : i32
    %c0_i32_0 = arith.constant 0 : i32
    return %c0_i32, %arg1 : i32, i32
  }
  func.func @transform_2(%arg0: i32, %arg1: i32) -> (i32, i32) {
    %c0_i32 = arith.constant 0 : i32
    %c0_i32_0 = arith.constant 0 : i32
    return %c0_i32, %arg1 : i32, i32
  }
  func.func @transform_3(%arg0: i32, %arg1: i32) -> (i32, i32) {
    %c0_i32 = arith.constant 0 : i32
    return %arg0, %arg1 : i32, i32
  }
}

</mosaic_0001>

<llo_original>
// kernel: tpu_custom_call.1
$region0: #{tpu_custom_call.1}
  #allocation0 [shape = 'u32[]', space=smem, size = 0x4, offset = 0x4, fixed_abs, tag = 'smem constant byte address 0x4 - core index']
  #allocation1 [shape = 'u32[144,128]{1,0:T(1,128)}', space=vmem, size = 0x12000, scoped, tag = 'internal scratch']
  %s0 = inlined_call_operand.vmem [shape: bf16[128,144], index: 0, kind: input, shape index: {}]
  %s1 = inlined_call_operand.vmem [shape: bf16[144,128], index: 1, kind: input, shape index: {}]
  %s2 = inlined_call_operand.vmem [shape: f32[1,128], index: 2, kind: input, shape index: {}]
  %s3 = inlined_call_operand.hbm [shape: f32[128,128], index: 3, kind: output, shape index: {}]
  %s4 = sld [smem:[#allocation0]]
  $region45: #{tpu_custom_call.1} parent=0
    _
  %s6 = ssub.s32 1, %s4
  %s7 = scalar_select 0, %s6, %s4
  $region1: #{tpu_custom_call.1} parent=0
    #allocation2 [shape = 'u8[16384]{0}', space=vmem, size = 0x4000, scoped, tag = 'output window, operand 0']
    #allocation3 [shape = 's32[2]{0}', space=sflag, size = 0x8, scoped, tag = 'scoped memory for tpu_custom_call.1']
    %8 = vsyncpa [#allocation3], 0
    %s9 = scalar_lea.sflag [#allocation3], 1
    %10 = vsyncpa %s9, 0
    loop: start=0, step=1, limit=10
    $region2: #{tpu_custom_call.1} parent=1 // loop_pre_header
      _
    $region3: #{tpu_custom_call.1} parent=1 // loop_header
      %s12 = sphi 0, %s16
      %p13 = scmp.ge.s32.totalorder %s12, 10
      %s19 = sphi 0, %s31
      %s20 = sphi 0, %s27
      %s21 = sphi 0, %s19
      %s22 = sphi 0, %s20
      %s23 = sphi 0, %s21
      %s24 = sphi 0, %s22
      %s34 = sphi 0, %s36
      %s37 = sphi 0, %s34
      %s38 = sphi 0, %s37
      %s54 = sphi 0, %s38
      %s60 = sphi 0, %s62
      %s63 = sphi 0, %s60
      %s64 = sphi 0, %s63
      %s80 = sphi 0, %s64
      %s86 = sphi 0, %s88
      %s89 = sphi 0, %s86
      %s90 = sphi 0, %s89
      %s106 = sphi 0, %s90
      %s114 = sphi 0, %s116
      %s117 = sphi 0, %s114
      %s118 = sphi 0, %s117
      %s134 = sphi 0, %s118
    $region4: #{tpu_custom_call.1} parent=1 // loop_header_branch
      %15 = sbr.rel (%p13) target = $region8
    $region5: #{tpu_custom_call.1} parent=1 // loop_body
      %s17 = ssub.s32 %s12, 1
      %s18 = ssub.s32 %s12, 2
      %s25 = sadd.s32 1, %s20
      %p26 = scmp.ge.s32.totalorder %s25, 1
      %s27 = scalar_select %p26, 0, %s25
      %s28 = sadd.s32 1, %s19
      %s29 = scalar_select %p26, %s28, %s19
      %p30 = scmp.ge.s32.totalorder %s29, 8
      %s31 = scalar_select %p30, 0, %s29
      %s32 = ssub.s32 %s19, %s31
      %p33 = scmp.eq.s32.totalorder %s32, 0
      %s35 = sadd.s32 %s34, 1
      %s36 = scalar_select %p33, %s34, %s35
      %p39 = pneg %p33
      %p40 = scmp.eq.s32.totalorder %s12, 7
      %p41 = por %p39, %p40
      %p42 = scmp.ne.s32.totalorder %s34, %s37
      %p43 = scmp.eq.s32.totalorder %s12, 0
      %p44 = por %p42, %p43
      %p45 = scmp.ne.s32.totalorder %s34, %s37
      %p46 = scmp.eq.s32.totalorder %s17, 7
      %p47 = por %p45, %p46
      %p48 = scmp.ne.s32.totalorder %s37, %s38
      %p49 = scmp.eq.s32.totalorder %s17, 0
      %p50 = por %p48, %p49
      %p51 = scmp.ne.s32.totalorder %s37, %s38
      %p52 = scmp.eq.s32.totalorder %s18, 7
      %p53 = por %p51, %p52
      %p55 = scmp.ne.s32.totalorder %s38, %s54
      %p56 = scmp.eq.s32.totalorder %s18, 0
      %p57 = por %p55, %p56
      %s58 = ssub.s32 %s20, %s27
      %p59 = scmp.eq.s32.totalorder %s58, 0
      %s61 = sadd.s32 %s60, 1
      %s62 = scalar_select %p59, %s60, %s61
      %p65 = pneg %p59
      %p66 = scmp.eq.s32.totalorder %s12, 7
      %p67 = por %p65, %p66
      %p68 = scmp.ne.s32.totalorder %s60, %s63
      %p69 = scmp.eq.s32.totalorder %s12, 0
      %p70 = por %p68, %p69
      %p71 = scmp.ne.s32.totalorder %s60, %s63
      %p72 = scmp.eq.s32.totalorder %s17, 7
      %p73 = por %p71, %p72
      %p74 = scmp.ne.s32.totalorder %s63, %s64
      %p75 = scmp.eq.s32.totalorder %s17, 0
      %p76 = por %p74, %p75
      %p77 = scmp.ne.s32.totalorder %s63, %s64
      %p78 = scmp.eq.s32.totalorder %s18, 7
      %p79 = por %p77, %p78
      %p81 = scmp.ne.s32.totalorder %s64, %s80
      %p82 = scmp.eq.s32.totalorder %s18, 0
      %p83 = por %p81, %p82
      %s84 = ssub.s32 %s20, %s27
      %p85 = scmp.eq.s32.totalorder %s84, 0
      %s87 = sadd.s32 %s86, 1
      %s88 = scalar_select %p85, %s86, %s87
      %p91 = pneg %p85
      %p92 = scmp.eq.s32.totalorder %s12, 7
      %p93 = por %p91, %p92
      %p94 = scmp.ne.s32.totalorder %s86, %s89
      %p95 = scmp.eq.s32.totalorder %s12, 0
      %p96 = por %p94, %p95
      %p97 = scmp.ne.s32.totalorder %s86, %s89
      %p98 = scmp.eq.s32.totalorder %s17, 7
      %p99 = por %p97, %p98
      %p100 = scmp.ne.s32.totalorder %s89, %s90
      %p101 = scmp.eq.s32.totalorder %s17, 0
      %p102 = por %p100, %p101
      %p103 = scmp.ne.s32.totalorder %s89, %s90
      %p104 = scmp.eq.s32.totalorder %s18, 7
      %p105 = por %p103, %p104
      %p107 = scmp.ne.s32.totalorder %s90, %s106
      %p108 = scmp.eq.s32.totalorder %s18, 0
      %p109 = por %p107, %p108
      %s110 = ssub.s32 %s19, %s31
      %s111 = ssub.s32 %s20, %s27
      %s112 = sor.u32 %s110, %s111
      %p113 = scmp.eq.s32.totalorder %s112, 0
      %s115 = sadd.s32 %s114, 1
      %s116 = scalar_select %p113, %s114, %s115
      %p119 = pneg %p113
      %p120 = scmp.eq.s32.totalorder %s12, 7
      %p121 = por %p119, %p120
      %p122 = scmp.ne.s32.totalorder %s114, %s117
      %p123 = scmp.eq.s32.totalorder %s12, 0
      %p124 = por %p122, %p123
      %p125 = scmp.ne.s32.totalorder %s114, %s117
      %p126 = scmp.eq.s32.totalorder %s17, 7
      %p127 = por %p125, %p126
      %p128 = scmp.ne.s32.totalorder %s117, %s118
      %p129 = scmp.eq.s32.totalorder %s17, 0
      %p130 = por %p128, %p129
      %p131 = scmp.ne.s32.totalorder %s117, %s118
      %p132 = scmp.eq.s32.totalorder %s18, 7
      %p133 = por %p131, %p132
      %p135 = scmp.ne.s32.totalorder %s118, %s134
      %p136 = scmp.eq.s32.totalorder %s18, 0
      %p137 = por %p135, %p136
      %p138 = scmp.le.s32.totalorder 1, %s12
      %p139 = scmp.lt.s32.totalorder %s12, 9
      %p140 = pnand %p138, %p139
      %p141 = pneg %p140
      // Predicated region
      $region9: #{tpu_custom_call.1} parent=5 // pred_check
        _
      $region10: #{tpu_custom_call.1} parent=5 // pred_check_branch
        %143 = sbr.rel (%p140) target = $region12
      $region11: #{tpu_custom_call.1} parent=5 // pred_region
        %s144 = ssub.s32 %s12, 1
        // Predicated region
        $region13: #{tpu_custom_call.1} parent=11 // pred_check
          %p145 = pneg %p76
        $region14: #{tpu_custom_call.1} parent=11 // pred_check_branch
          %147 = sbr.rel (%p145) target = $region16
        $region15: #{tpu_custom_call.1} parent=11 // pred_region
          %p148 = scmp.lt.s32.totalorder %s22, 0
          %s149 = scalar_select %p148, %s22, 0
          %s150 = smul.addr %s149, 4
          %s151 = scalar_lea.vmem %s1, %s150
        $region16: #{tpu_custom_call.1} parent=11 // pred_fallthru
          _
        // Predicated region
        $region17: #{tpu_custom_call.1} parent=11 // pred_check
          %p152 = pneg %p102
        $region18: #{tpu_custom_call.1} parent=11 // pred_check_branch
          %154 = sbr.rel (%p152) target = $region20
        $region19: #{tpu_custom_call.1} parent=11 // pred_region
          %p155 = scmp.lt.s32.totalorder %s22, 0
          %s156 = scalar_select %p155, %s22, 0
          %s157 = scalar_lea.vmem %s2, %s156
        $region20: #{tpu_custom_call.1} parent=11 // pred_fallthru
          _
      $region12: #{tpu_custom_call.1} parent=5 // pred_fallthru
        _
      %p158 = scmp.lt.s32.totalorder %s12, 8
      // Predicated region
      $region21: #{tpu_custom_call.1} parent=5 // pred_check
        %p159 = pneg %p158
      $region22: #{tpu_custom_call.1} parent=5 // pred_check_branch
        %161 = sbr.rel (%p159) target = $region24
      $region23: #{tpu_custom_call.1} parent=5 // pred_region
        // Predicated region
        $region25: #{tpu_custom_call.1} parent=23 // pred_check
          %p162 = pneg %p44
        $region26: #{tpu_custom_call.1} parent=23 // pred_check_branch
          %164 = sbr.rel (%p162) target = $region28
        $region27: #{tpu_custom_call.1} parent=23 // pred_region
          %s165 = smul.u32 2, %s19
          %p166 = scmp.lt.s32.totalorder %s165, 15
          %s167 = scalar_select %p166, %s165, 15
          %s168 = smul.addr %s167, 2
          %s169 = smul.addr %s168, 4
          %s170 = scalar_lea.vmem %s0, %s169
          %s171 = smul.u32 2, %s19
        $region28: #{tpu_custom_call.1} parent=23 // pred_fallthru
          _
      $region24: #{tpu_custom_call.1} parent=5 // pred_fallthru
        _
      %p172 = scmp.le.s32.totalorder 1, %s12
      %p173 = scmp.lt.s32.totalorder %s12, 9
      %p174 = pnand %p172, %p173
      %p175 = pneg %p174
      // Predicated region
      $region29: #{tpu_custom_call.1} parent=5 // pred_check
        _
      $region30: #{tpu_custom_call.1} parent=5 // pred_check_branch
        %177 = sbr.rel (%p174) target = $region32
      $region31: #{tpu_custom_call.1} parent=5 // pred_region
        %s178 = ssub.s32 %s12, 1
        %s179 = smul.u32 2, %s21
        %p180 = scmp.lt.s32.totalorder %s179, 15
        %s181 = scalar_select %p180, %s179, 15
        %s182 = smul.addr %s181, 2
        %s183 = smul.addr %s182, 4
        %s184 = scalar_lea.vmem %s0, %s183
        %p185 = pneg %p50
        %p186 = pneg %p47
        %p187 = scmp.lt.s32.totalorder %s22, 0
        %s188 = scalar_select %p187, %s22, 0
        %s189 = smul.addr %s188, 4
        %s190 = scalar_lea.vmem %s1, %s189
        %p191 = pneg %p76
        %p192 = pneg %p73
        %p193 = scmp.lt.s32.totalorder %s22, 0
        %s194 = scalar_select %p193, %s22, 0
        %s195 = scalar_lea.vmem %s2, %s194
        %p196 = pneg %p102
        %p197 = pneg %p99
        %p198 = pneg %p130
        %p199 = pneg %p127
        %s200 = sand.u32 %s117, 1
        %s201 = scalar_lea.sflag [#allocation3], %s200
        %s202 = sand.u32 %s117, 1
        %s203 = smul.addr %s202, 16
        %s204 = scalar_lea.vmem [#allocation2], %s203
        %s205 = smul.u32 2, %s21
        %p206 = scmp.lt.s32.totalorder %s205, 15
        %s207 = scalar_select %p206, %s205, 15
        %s208 = smul.addr %s207, 2
        %s209 = smul.addr %s208, 4
        %s210 = scalar_lea.vmem %s0, %s209
        %s211 = smul.u32 2, %s21
        %p212 = scmp.lt.s32.totalorder %s22, 0
        %s213 = scalar_select %p212, %s22, 0
        %s214 = smul.addr %s213, 4
        %s215 = scalar_lea.vmem %s1, %s214
        %p216 = scmp.lt.s32.totalorder %s22, 0
        %s217 = scalar_select %p216, %s22, 0
        %s218 = scalar_lea.vmem %s2, %s217
        %s219 = smul.u32 2, %s21
        %v221 = vld [vmem:[%s210] sm:$0xff]
        %v222 = vld [vmem:[%s210 + $0x8] sm:$0xff]
        %v223 = vld [vmem:[%s215] sm:$0xf]
        %v224 = vld [vmem:[%s215 + $0x4] sm:$0xf]
        %v225 = vld [vmem:[%s215 + $0x8] sm:$0xf]
        %v226 = vld [vmem:[%s215 + $0xc] sm:$0xf]
        %v227 = vld [vmem:[%s215 + $0x10] sm:$0xf]
        %v228 = vld [vmem:[%s215 + $0x14] sm:$0xf]
        %v229 = vld [vmem:[%s215 + $0x18] sm:$0xf]
        %v230 = vld [vmem:[%s215 + $0x1c] sm:$0xf]
        %v231 = vld [vmem:[%s215 + $0x20] sm:$0xf]
        %v232 = vld [vmem:[%s215 + $0x24] sm:$0xf]
        %v233 = vld [vmem:[%s215 + $0x28] sm:$0xf]
        %v234 = vld [vmem:[%s215 + $0x2c] sm:$0xf]
        %v235 = vld [vmem:[%s215 + $0x30] sm:$0xf]
        %v236 = vld [vmem:[%s215 + $0x34] sm:$0xf]
        %v237 = vld [vmem:[%s215 + $0x38] sm:$0xf]
        %v238 = vld [vmem:[%s215 + $0x3c] sm:$0xf]
        %v239 = vld [vmem:[%s215 + $0x40] sm:$0xf]
        %v240 = vld [vmem:[%s215 + $0x44] sm:$0xf]
        %v241 = vld [vmem:[%s218] sm:$0x1]
        %v243 = vlaneseq
        %v244 = vshrl.u32 %v243, 7
        %v245 = vsub.s32 0, %v244
        %v246 = vrot.slane %v241, %v245
        %v250 = vunpack.c.l.b16 %v221
        %v251 = vunpack.c.h.b16 %v221
        %v252 = vunpack.c.l.b16 %v222
        %v253 = vunpack.c.h.b16 %v222
        %v254 = vpack.c.b16 %v252, %v250
        %v255 = vpack.c.b16 %v253, %v251
        %v275 = vunpack.c.l.b16 %v223
        %v276 = vunpack.c.l.b16 %v224
        %v277 = vunpack.c.l.b16 %v225
        %v278 = vunpack.c.l.b16 %v226
        %v279 = vunpack.c.l.b16 %v227
        %v280 = vunpack.c.l.b16 %v228
        %v281 = vunpack.c.l.b16 %v229
        %v282 = vunpack.c.l.b16 %v230
        %v283 = vunpack.c.l.b16 %v231
        %v284 = vunpack.c.l.b16 %v232
        %v285 = vunpack.c.l.b16 %v233
        %v286 = vunpack.c.l.b16 %v234
        %v287 = vunpack.c.l.b16 %v235
        %v288 = vunpack.c.l.b16 %v236
        %v289 = vunpack.c.l.b16 %v237
        %v290 = vunpack.c.l.b16 %v238
        %v291 = vunpack.c.l.b16 %v239
        %v292 = vunpack.c.l.b16 %v240
        %v293 = vpack.c.b16 %v276, %v275
        %v294 = vpack.c.b16 %v278, %v277
        %v295 = vpack.c.b16 %v280, %v279
        %v296 = vpack.c.b16 %v282, %v281
        %v297 = vpack.c.b16 %v284, %v283
        %v298 = vpack.c.b16 %v286, %v285
        %v299 = vpack.c.b16 %v288, %v287
        %v300 = vpack.c.b16 %v290, %v289
        %v301 = vpack.c.b16 %v292, %v291
        %vm311 = vcmask 130048
        %v313 = vsel %vm311, %v255, 0
        %315 = vmatprep.subr.bf16.mxu0 0
        %316 = vmatpush1.bf16.msra.mxu0 %v293
        %317 = vmatprep.subr.bf16.mxu0 0
        %318 = vmatpush1.bf16.msra.mxu0 %v294
        %319 = vmatprep.subr.bf16.mxu0 0
        %320 = vmatpush1.bf16.msra.mxu0 %v295
        %321 = vmatprep.subr.bf16.mxu0 0
        %322 = vmatpush1.bf16.msra.mxu0 %v296
        %323 = vmatprep.subr.bf16.mxu0 0
        %324 = vmatpush1.bf16.msra.mxu0 %v297
        %325 = vmatprep.subr.bf16.mxu0 0
        %326 = vmatpush1.bf16.msra.mxu0 %v298
        %327 = vmatprep.subr.bf16.mxu0 0
        %328 = vmatpush1.bf16.msra.mxu0 %v299
        %329 = vmatprep.subr.bf16.mxu0 0
        %330 = vmatpush1.bf16.msra.mxu0 %v300
        %331 = vmatprep.subr.bf16.mxu0 0
        %332 = vmatpush1.bf16.msra.mxu0 %v301
        %333 = vmatprep.subr.bf16.mxu0 0
        %334 = vmatpush1.bf16.msra.mxu0 0
        %335 = vmatprep.subr.bf16.mxu0 0
        %336 = vmatpush1.bf16.msra.mxu0 0
        %337 = vmatprep.subr.bf16.mxu0 0
        %338 = vmatpush1.bf16.msra.mxu0 0
        %339 = vmatprep.subr.bf16.mxu0 0
        %340 = vmatpush1.bf16.msra.mxu0 0
        %341 = vmatprep.subr.bf16.mxu0 0
        %342 = vmatpush1.bf16.msra.mxu0 0
        %343 = vmatprep.subr.bf16.mxu0 0
        %344 = vmatpush1.bf16.msra.mxu0 0
        %345 = vmatprep.subr.bf16.mxu0 0
        %346 = vmatpush1.bf16.msra.mxu0 0
        %347 = vmatprep.mubr.bf16.mxu0 %v313
        %348 = vmatmul.mubr.bf16.gmra.mrb[0].mxu0 %v254
        %v349 = vpop.f32.mrb[0].mxu0
        %v350 = vadd.f32 %v246, %v349
        %v351 = vpop.f32.mrb[0].mxu0
        %v352 = vpop.f32.mrb[0].mxu0
        %v353 = vadd.f32 %v246, %v352
        %v354 = vpop.f32.mrb[0].mxu0
        %355 = vdwg.mxu0
        %356 = vst [vmem:[%s204] sm:$0xff] %v350
        %357 = vst [vmem:[%s204 + $0x8] sm:$0xff] %v353
        %s358 = sand.u32 %s117, 1
        %s359 = scalar_lea.sflag [#allocation3], %s358
        %s360 = sand.u32 %s117, 1
        %s361 = smul.addr %s360, 16
        %s362 = scalar_lea.vmem [#allocation2], %s361
        // Predicated region
        $region33: #{tpu_custom_call.1} parent=31 // pred_check
          %p363 = pneg %p127
        $region34: #{tpu_custom_call.1} parent=31 // pred_check_branch
          %365 = sbr.rel (%p363) target = $region36
        $region35: #{tpu_custom_call.1} parent=31 // pred_region
          %s366 = smul.u32 2, %s21
          %s368 = ssub.s32 256, 256
          %369 = vsyncadd %s359, %s368
          %s370 = sadd.s32 %s22, %s366
          %s371 = smul.addr %s370, 128
          %s372 = scalar_lea.hbm %s3, %s371
          %s373 = sshll.u32 %s362, 4
          %s374 = int_to_ptr.vmem [resolvable:$true] %s373
          %379 = dma.vmem_to_hbm [thread:$0]  %s374, 256, %s372, %s359, 128, 128, 8
        $region36: #{tpu_custom_call.1} parent=31 // pred_fallthru
          _
      $region32: #{tpu_custom_call.1} parent=5 // pred_fallthru
        _
      %p380 = scmp.le.s32.totalorder 2, %s12
      // Predicated region
      $region37: #{tpu_custom_call.1} parent=5 // pred_check
        %p381 = pneg %p380
      $region38: #{tpu_custom_call.1} parent=5 // pred_check_branch
        %383 = sbr.rel (%p381) target = $region40
      $region39: #{tpu_custom_call.1} parent=5 // pred_region
        %s384 = ssub.s32 %s12, 2
        // Predicated region
        $region41: #{tpu_custom_call.1} parent=39 // pred_check
          %p385 = pneg %p133
        $region42: #{tpu_custom_call.1} parent=39 // pred_check_branch
          %387 = sbr.rel (%p385) target = $region44
        $region43: #{tpu_custom_call.1} parent=39 // pred_region
          %s388 = sand.u32 %s118, 1
          %s389 = scalar_lea.sflag [#allocation3], %s388
          %s390 = sand.u32 %s118, 1
          %s391 = smul.addr %s390, 16
          %s392 = scalar_lea.vmem [#allocation2], %s391
          %393 = dma.done %s389, 256
        $region44: #{tpu_custom_call.1} parent=39 // pred_fallthru
          _
      $region40: #{tpu_custom_call.1} parent=5 // pred_fallthru
        _
    $region6: #{tpu_custom_call.1} parent=1 // loop_footer
      %s16 = sadd.s32 1, %s12
    $region7: #{tpu_custom_call.1} parent=1 // loop_footer_branch
      %11 = sbr.rel target = $region3
    $region8: #{tpu_custom_call.1} parent=1 // loop_exit
      _
    %394 = vsyncpa [#allocation3], 1
    %s395 = scalar_lea.sflag [#allocation3], 1
    %396 = vsyncpa %s395, 1

// kernel: tpu_custom_call.1
$region0: #{tpu_custom_call.1}
  #allocation0 [shape = 'u32[]', space=smem, size = 0x4, offset = 0x4, fixed_abs, tag = 'smem constant byte address 0x4 - core index']
  #allocation1 [shape = 'u32[144,128]{1,0:T(1,128)}', space=vmem, size = 0x12000, scoped, tag = 'internal scratch']
  %s0 = inlined_call_operand.vmem [shape: bf16[128,144], index: 0, kind: input, shape index: {}]
  %s1 = inlined_call_operand.vmem [shape: bf16[144,128], index: 1, kind: input, shape index: {}]
  %s2 = inlined_call_operand.vmem [shape: f32[1,128], index: 2, kind: input, shape index: {}]
  %s3 = inlined_call_operand.hbm [shape: f32[128,128], index: 3, kind: output, shape index: {}]
  %s4 = sld [smem:[#allocation0]]
  $region45: #{tpu_custom_call.1} parent=0
    _
  %s6 = ssub.s32 1, %s4
  %s7 = scalar_select 0, %s6, %s4
  $region1: #{tpu_custom_call.1} parent=0
    #allocation2 [shape = 'u8[16384]{0}', space=vmem, size = 0x4000, scoped, tag = 'output window, operand 0']
    #allocation3 [shape = 's32[2]{0}', space=sflag, size = 0x8, scoped, tag = 'scoped memory for tpu_custom_call.1']
    %8 = vsyncpa [#allocation3], 0
    %s9 = scalar_lea.sflag [#allocation3], 1
    %10 = vsyncpa %s9, 0
    loop: start=0, step=1, limit=10
    $region2: #{tpu_custom_call.1} parent=1 // loop_pre_header
      _
    $region3: #{tpu_custom_call.1} parent=1 // loop_header
      %s12 = sphi 0, %s16
      %p13 = scmp.ge.s32.totalorder %s12, 10
      %s19 = sphi 0, %s31
      %s20 = sphi 0, %s27
      %s21 = sphi 0, %s19
      %s22 = sphi 0, %s20
      %s23 = sphi 0, %s21
      %s24 = sphi 0, %s22
      %s34 = sphi 0, %s36
      %s37 = sphi 0, %s34
      %s38 = sphi 0, %s37
      %s54 = sphi 0, %s38
      %s60 = sphi 0, %s62
      %s63 = sphi 0, %s60
      %s64 = sphi 0, %s63
      %s80 = sphi 0, %s64
      %s86 = sphi 0, %s88
      %s89 = sphi 0, %s86
      %s90 = sphi 0, %s89
      %s106 = sphi 0, %s90
      %s114 = sphi 0, %s116
      %s117 = sphi 0, %s114
      %s118 = sphi 0, %s117
      %s134 = sphi 0, %s118
    $region4: #{tpu_custom_call.1} parent=1 // loop_header_branch
      %15 = sbr.rel (%p13) target = $region8
    $region5: #{tpu_custom_call.1} parent=1 // loop_body
      %s17 = ssub.s32 %s12, 1
      %s18 = ssub.s32 %s12, 2
      %s25 = sadd.s32 1, %s20
      %p26 = scmp.ge.s32.totalorder %s25, 1
      %s27 = scalar_select %p26, 0, %s25
      %s28 = sadd.s32 1, %s19
      %s29 = scalar_select %p26, %s28, %s19
      %p30 = scmp.ge.s32.totalorder %s29, 8
      %s31 = scalar_select %p30, 0, %s29
      %s32 = ssub.s32 %s19, %s31
      %p33 = scmp.eq.s32.totalorder %s32, 0
      %s35 = sadd.s32 %s34, 1
      %s36 = scalar_select %p33, %s34, %s35
      %p39 = pneg %p33
      %p40 = scmp.eq.s32.totalorder %s12, 7
      %p41 = por %p39, %p40
      %p42 = scmp.ne.s32.totalorder %s34, %s37
      %p43 = scmp.eq.s32.totalorder %s12, 0
      %p44 = por %p42, %p43
      %p45 = scmp.ne.s32.totalorder %s34, %s37
      %p46 = scmp.eq.s32.totalorder %s17, 7
      %p47 = por %p45, %p46
      %p48 = scmp.ne.s32.totalorder %s37, %s38
      %p49 = scmp.eq.s32.totalorder %s17, 0
      %p50 = por %p48, %p49
      %p51 = scmp.ne.s32.totalorder %s37, %s38
      %p52 = scmp.eq.s32.totalorder %s18, 7
      %p53 = por %p51, %p52
      %p55 = scmp.ne.s32.totalorder %s38, %s54
      %p56 = scmp.eq.s32.totalorder %s18, 0
      %p57 = por %p55, %p56
      %s58 = ssub.s32 %s20, %s27
      %p59 = scmp.eq.s32.totalorder %s58, 0
      %s61 = sadd.s32 %s60, 1
      %s62 = scalar_select %p59, %s60, %s61
      %p65 = pneg %p59
      %p66 = scmp.eq.s32.totalorder %s12, 7
      %p67 = por %p65, %p66
      %p68 = scmp.ne.s32.totalorder %s60, %s63
      %p69 = scmp.eq.s32.totalorder %s12, 0
      %p70 = por %p68, %p69
      %p71 = scmp.ne.s32.totalorder %s60, %s63
      %p72 = scmp.eq.s32.totalorder %s17, 7
      %p73 = por %p71, %p72
      %p74 = scmp.ne.s32.totalorder %s63, %s64
      %p75 = scmp.eq.s32.totalorder %s17, 0
      %p76 = por %p74, %p75
      %p77 = scmp.ne.s32.totalorder %s63, %s64
      %p78 = scmp.eq.s32.totalorder %s18, 7
      %p79 = por %p77, %p78
      %p81 = scmp.ne.s32.totalorder %s64, %s80
      %p82 = scmp.eq.s32.totalorder %s18, 0
      %p83 = por %p81, %p82
      %s84 = ssub.s32 %s20, %s27
      %p85 = scmp.eq.s32.totalorder %s84, 0
      %s87 = sadd.s32 %s86, 1
      %s88 = scalar_select %p85, %s86, %s87
      %p91 = pneg %p85
      %p92 = scmp.eq.s32.totalorder %s12, 7
      %p93 = por %p91, %p92
      %p94 = scmp.ne.s32.totalorder %s86, %s89
      %p95 = scmp.eq.s32.totalorder %s12, 0
      %p96 = por %p94, %p95
      %p97 = scmp.ne.s32.totalorder %s86, %s89
      %p98 = scmp.eq.s32.totalorder %s17, 7
      %p99 = por %p97, %p98
      %p100 = scmp.ne.s32.totalorder %s89, %s90
      %p101 = scmp.eq.s32.totalorder %s17, 0
      %p102 = por %p100, %p101
      %p103 = scmp.ne.s32.totalorder %s89, %s90
      %p104 = scmp.eq.s32.totalorder %s18, 7
      %p105 = por %p103, %p104
      %p107 = scmp.ne.s32.totalorder %s90, %s106
      %p108 = scmp.eq.s32.totalorder %s18, 0
      %p109 = por %p107, %p108
      %s110 = ssub.s32 %s19, %s31
      %s111 = ssub.s32 %s20, %s27
      %s112 = sor.u32 %s110, %s111
      %p113 = scmp.eq.s32.totalorder %s112, 0
      %s115 = sadd.s32 %s114, 1
      %s116 = scalar_select %p113, %s114, %s115
      %p119 = pneg %p113
      %p120 = scmp.eq.s32.totalorder %s12, 7
      %p121 = por %p119, %p120
      %p122 = scmp.ne.s32.totalorder %s114, %s117
      %p123 = scmp.eq.s32.totalorder %s12, 0
      %p124 = por %p122, %p123
      %p125 = scmp.ne.s32.totalorder %s114, %s117
      %p126 = scmp.eq.s32.totalorder %s17, 7
      %p127 = por %p125, %p126
      %p128 = scmp.ne.s32.totalorder %s117, %s118
      %p129 = scmp.eq.s32.totalorder %s17, 0
      %p130 = por %p128, %p129
      %p131 = scmp.ne.s32.totalorder %s117, %s118
      %p132 = scmp.eq.s32.totalorder %s18, 7
      %p133 = por %p131, %p132
      %p135 = scmp.ne.s32.totalorder %s118, %s134
      %p136 = scmp.eq.s32.totalorder %s18, 0
      %p137 = por %p135, %p136
      %p138 = scmp.le.s32.totalorder 1, %s12
      %p139 = scmp.lt.s32.totalorder %s12, 9
      %p140 = pnand %p138, %p139
      %p141 = pneg %p140
      // Predicated region
      $region9: #{tpu_custom_call.1} parent=5 // pred_check
        _
      $region10: #{tpu_custom_call.1} parent=5 // pred_check_branch
        %143 = sbr.rel (%p140) target = $region12
      $region11: #{tpu_custom_call.1} parent=5 // pred_region
        %s144 = ssub.s32 %s12, 1
        // Predicated region
        $region13: #{tpu_custom_call.1} parent=11 // pred_check
          %p145 = pneg %p76
        $region14: #{tpu_custom_call.1} parent=11 // pred_check_branch
          %147 = sbr.rel (%p145) target = $region16
        $region15: #{tpu_custom_call.1} parent=11 // pred_region
          %p148 = scmp.lt.s32.totalorder %s22, 0
          %s149 = scalar_select %p148, %s22, 0
          %s150 = smul.addr %s149, 4
          %s151 = scalar_lea.vmem %s1, %s150
        $region16: #{tpu_custom_call.1} parent=11 // pred_fallthru
          _
        // Predicated region
        $region17: #{tpu_custom_call.1} parent=11 // pred_check
          %p152 = pneg %p102
        $region18: #{tpu_custom_call.1} parent=11 // pred_check_branch
          %154 = sbr.rel (%p152) target = $region20
        $region19: #{tpu_custom_call.1} parent=11 // pred_region
          %p155 = scmp.lt.s32.totalorder %s22, 0
          %s156 = scalar_select %p155, %s22, 0
          %s157 = scalar_lea.vmem %s2, %s156
        $region20: #{tpu_custom_call.1} parent=11 // pred_fallthru
          _
      $region12: #{tpu_custom_call.1} parent=5 // pred_fallthru
        _
      %p158 = scmp.lt.s32.totalorder %s12, 8
      // Predicated region
      $region21: #{tpu_custom_call.1} parent=5 // pred_check
        %p159 = pneg %p158
      $region22: #{tpu_custom_call.1} parent=5 // pred_check_branch
        %161 = sbr.rel (%p159) target = $region24
      $region23: #{tpu_custom_call.1} parent=5 // pred_region
        // Predicated region
        $region25: #{tpu_custom_call.1} parent=23 // pred_check
          %p162 = pneg %p44
        $region26: #{tpu_custom_call.1} parent=23 // pred_check_branch
          %164 = sbr.rel (%p162) target = $region28
        $region27: #{tpu_custom_call.1} parent=23 // pred_region
          %s165 = smul.u32 2, %s19
          %p166 = scmp.lt.s32.totalorder %s165, 15
          %s167 = scalar_select %p166, %s165, 15
          %s168 = smul.addr %s167, 2
          %s169 = smul.addr %s168, 4
          %s170 = scalar_lea.vmem %s0, %s169
          %s171 = smul.u32 2, %s19
        $region28: #{tpu_custom_call.1} parent=23 // pred_fallthru
          _
      $region24: #{tpu_custom_call.1} parent=5 // pred_fallthru
        _
      %p172 = scmp.le.s32.totalorder 1, %s12
      %p173 = scmp.lt.s32.totalorder %s12, 9
      %p174 = pnand %p172, %p173
      %p175 = pneg %p174
      // Predicated region
      $region29: #{tpu_custom_call.1} parent=5 // pred_check
        _
      $region30: #{tpu_custom_call.1} parent=5 // pred_check_branch
        %177 = sbr.rel (%p174) target = $region32
      $region31: #{tpu_custom_call.1} parent=5 // pred_region
        %s178 = ssub.s32 %s12, 1
        %s179 = smul.u32 2, %s21
        %p180 = scmp.lt.s32.totalorder %s179, 15
        %s181 = scalar_select %p180, %s179, 15
        %s182 = smul.addr %s181, 2
        %s183 = smul.addr %s182, 4
        %s184 = scalar_lea.vmem %s0, %s183
        %p185 = pneg %p50
        %p186 = pneg %p47
        %p187 = scmp.lt.s32.totalorder %s22, 0
        %s188 = scalar_select %p187, %s22, 0
        %s189 = smul.addr %s188, 4
        %s190 = scalar_lea.vmem %s1, %s189
        %p191 = pneg %p76
        %p192 = pneg %p73
        %p193 = scmp.lt.s32.totalorder %s22, 0
        %s194 = scalar_select %p193, %s22, 0
        %s195 = scalar_lea.vmem %s2, %s194
        %p196 = pneg %p102
        %p197 = pneg %p99
        %p198 = pneg %p130
        %p199 = pneg %p127
        %s200 = sand.u32 %s117, 1
        %s201 = scalar_lea.sflag [#allocation3], %s200
        %s202 = sand.u32 %s117, 1
        %s203 = smul.addr %s202, 16
        %s204 = scalar_lea.vmem [#allocation2], %s203
        %s205 = smul.u32 2, %s21
        %p206 = scmp.lt.s32.totalorder %s205, 15
        %s207 = scalar_select %p206, %s205, 15
        %s208 = smul.addr %s207, 2
        %s209 = smul.addr %s208, 4
        %s210 = scalar_lea.vmem %s0, %s209
        %s211 = smul.u32 2, %s21
        %p212 = scmp.lt.s32.totalorder %s22, 0
        %s213 = scalar_select %p212, %s22, 0
        %s214 = smul.addr %s213, 4
        %s215 = scalar_lea.vmem %s1, %s214
        %p216 = scmp.lt.s32.totalorder %s22, 0
        %s217 = scalar_select %p216, %s22, 0
        %s218 = scalar_lea.vmem %s2, %s217
        %s219 = smul.u32 2, %s21
        %v221 = vld [vmem:[%s210] sm:$0xff]
        %v222 = vld [vmem:[%s210 + $0x8] sm:$0xff]
        %v223 = vld [vmem:[%s215] sm:$0xf]
        %v224 = vld [vmem:[%s215 + $0x4] sm:$0xf]
        %v225 = vld [vmem:[%s215 + $0x8] sm:$0xf]
        %v226 = vld [vmem:[%s215 + $0xc] sm:$0xf]
        %v227 = vld [vmem:[%s215 + $0x10] sm:$0xf]
        %v228 = vld [vmem:[%s215 + $0x14] sm:$0xf]
        %v229 = vld [vmem:[%s215 + $0x18] sm:$0xf]
        %v230 = vld [vmem:[%s215 + $0x1c] sm:$0xf]
        %v231 = vld [vmem:[%s215 + $0x20] sm:$0xf]
        %v232 = vld [vmem:[%s215 + $0x24] sm:$0xf]
        %v233 = vld [vmem:[%s215 + $0x28] sm:$0xf]
        %v234 = vld [vmem:[%s215 + $0x2c] sm:$0xf]
        %v235 = vld [vmem:[%s215 + $0x30] sm:$0xf]
        %v236 = vld [vmem:[%s215 + $0x34] sm:$0xf]
        %v237 = vld [vmem:[%s215 + $0x38] sm:$0xf]
        %v238 = vld [vmem:[%s215 + $0x3c] sm:$0xf]
        %v239 = vld [vmem:[%s215 + $0x40] sm:$0xf]
        %v240 = vld [vmem:[%s215 + $0x44] sm:$0xf]
        %v241 = vld [vmem:[%s218] sm:$0x1]
        %v243 = vlaneseq
        %v244 = vshrl.u32 %v243, 7
        %v245 = vsub.s32 0, %v244
        %v246 = vrot.slane %v241, %v245
        %v250 = vunpack.c.l.b16 %v221
        %v251 = vunpack.c.h.b16 %v221
        %v252 = vunpack.c.l.b16 %v222
        %v253 = vunpack.c.h.b16 %v222
        %v254 = vpack.c.b16 %v252, %v250
        %v255 = vpack.c.b16 %v253, %v251
        %v275 = vunpack.c.l.b16 %v223
        %v276 = vunpack.c.l.b16 %v224
        %v277 = vunpack.c.l.b16 %v225
        %v278 = vunpack.c.l.b16 %v226
        %v279 = vunpack.c.l.b16 %v227
        %v280 = vunpack.c.l.b16 %v228
        %v281 = vunpack.c.l.b16 %v229
        %v282 = vunpack.c.l.b16 %v230
        %v283 = vunpack.c.l.b16 %v231
        %v284 = vunpack.c.l.b16 %v232
        %v285 = vunpack.c.l.b16 %v233
        %v286 = vunpack.c.l.b16 %v234
        %v287 = vunpack.c.l.b16 %v235
        %v288 = vunpack.c.l.b16 %v236
        %v289 = vunpack.c.l.b16 %v237
        %v290 = vunpack.c.l.b16 %v238
        %v291 = vunpack.c.l.b16 %v239
        %v292 = vunpack.c.l.b16 %v240
        %v293 = vpack.c.b16 %v276, %v275
        %v294 = vpack.c.b16 %v278, %v277
        %v295 = vpack.c.b16 %v280, %v279
        %v296 = vpack.c.b16 %v282, %v281
        %v297 = vpack.c.b16 %v284, %v283
        %v298 = vpack.c.b16 %v286, %v285
        %v299 = vpack.c.b16 %v288, %v287
        %v300 = vpack.c.b16 %v290, %v289
        %v301 = vpack.c.b16 %v292, %v291
        %vm311 = vcmask 130048
        %v313 = vsel %vm311, %v255, 0
        %315 = vmatprep.subr.bf16.mxu0 0
        %316 = vmatpush1.bf16.msra.mxu0 %v293
        %317 = vmatprep.subr.bf16.mxu0 0
        %318 = vmatpush1.bf16.msra.mxu0 %v294
        %319 = vmatprep.subr.bf16.mxu0 0
        %320 = vmatpush1.bf16.msra.mxu0 %v295
        %321 = vmatprep.subr.bf16.mxu0 0
        %322 = vmatpush1.bf16.msra.mxu0 %v296
        %323 = vmatprep.subr.bf16.mxu0 0
        %324 = vmatpush1.bf16.msra.mxu0 %v297
        %325 = vmatprep.subr.bf16.mxu0 0
        %326 = vmatpush1.bf16.msra.mxu0 %v298
        %327 = vmatprep.subr.bf16.mxu0 0
        %328 = vmatpush1.bf16.msra.mxu0 %v299
        %329 = vmatprep.subr.bf16.mxu0 0
        %330 = vmatpush1.bf16.msra.mxu0 %v300
        %331 = vmatprep.subr.bf16.mxu0 0
        %332 = vmatpush1.bf16.msra.mxu0 %v301
        %333 = vmatprep.subr.bf16.mxu0 0
        %334 = vmatpush1.bf16.msra.mxu0 0
        %335 = vmatprep.subr.bf16.mxu0 0
        %336 = vmatpush1.bf16.msra.mxu0 0
        %337 = vmatprep.subr.bf16.mxu0 0
        %338 = vmatpush1.bf16.msra.mxu0 0
        %339 = vmatprep.subr.bf16.mxu0 0
        %340 = vmatpush1.bf16.msra.mxu0 0
        %341 = vmatprep.subr.bf16.mxu0 0
        %342 = vmatpush1.bf16.msra.mxu0 0
        %343 = vmatprep.subr.bf16.mxu0 0
        %344 = vmatpush1.bf16.msra.mxu0 0
        %345 = vmatprep.subr.bf16.mxu0 0
        %346 = vmatpush1.bf16.msra.mxu0 0
        %347 = vmatprep.mubr.bf16.mxu0 %v313
        %348 = vmatmul.mubr.bf16.gmra.mrb[0].mxu0 %v254
        %v349 = vpop.f32.mrb[0].mxu0
        %v350 = vadd.f32 %v246, %v349
        %v351 = vpop.f32.mrb[0].mxu0
        %v352 = vpop.f32.mrb[0].mxu0
        %v353 = vadd.f32 %v246, %v352
        %v354 = vpop.f32.mrb[0].mxu0
        %355 = vdwg.mxu0
        %356 = vst [vmem:[%s204] sm:$0xff] %v350
        %357 = vst [vmem:[%s204 + $0x8] sm:$0xff] %v353
        %s358 = sand.u32 %s117, 1
        %s359 = scalar_lea.sflag [#allocation3], %s358
        %s360 = sand.u32 %s117, 1
        %s361 = smul.addr %s360, 16
        %s362 = scalar_lea.vmem [#allocation2], %s361
        // Predicated region
        $region33: #{tpu_custom_call.1} parent=31 // pred_check
          %p363 = pneg %p127
        $region34: #{tpu_custom_call.1} parent=31 // pred_check_branch
          %365 = sbr.rel (%p363) target = $region36
        $region35: #{tpu_custom_call.1} parent=31 // pred_region
          %s366 = smul.u32 2, %s21
          %s368 = ssub.s32 256, 256
          %369 = vsyncadd %s359, %s368
          %s370 = sadd.s32 %s22, %s366
          %s371 = smul.addr %s370, 128
          %s372 = scalar_lea.hbm %s3, %s371
          %s373 = sshll.u32 %s362, 4
          %s374 = int_to_ptr.vmem [resolvable:$true] %s373
          %379 = dma.vmem_to_hbm [thread:$0]  %s374, 256, %s372, %s359, 128, 128, 8
        $region36: #{tpu_custom_call.1} parent=31 // pred_fallthru
          _
      $region32: #{tpu_custom_call.1} parent=5 // pred_fallthru
        _
      %p380 = scmp.le.s32.totalorder 2, %s12
      // Predicated region
      $region37: #{tpu_custom_call.1} parent=5 // pred_check
        %p381 = pneg %p380
      $region38: #{tpu_custom_call.1} parent=5 // pred_check_branch
        %383 = sbr.rel (%p381) target = $region40
      $region39: #{tpu_custom_call.1} parent=5 // pred_region
        %s384 = ssub.s32 %s12, 2
        // Predicated region
        $region41: #{tpu_custom_call.1} parent=39 // pred_check
          %p385 = pneg %p133
        $region42: #{tpu_custom_call.1} parent=39 // pred_check_branch
          %387 = sbr.rel (%p385) target = $region44
        $region43: #{tpu_custom_call.1} parent=39 // pred_region
          %s388 = sand.u32 %s118, 1
          %s389 = scalar_lea.sflag [#allocation3], %s388
          %s390 = sand.u32 %s118, 1
          %s391 = smul.addr %s390, 16
          %s392 = scalar_lea.vmem [#allocation2], %s391
          %393 = dma.done %s389, 256
        $region44: #{tpu_custom_call.1} parent=39 // pred_fallthru
          _
      $region40: #{tpu_custom_call.1} parent=5 // pred_fallthru
        _
    $region6: #{tpu_custom_call.1} parent=1 // loop_footer
      %s16 = sadd.s32 1, %s12
    $region7: #{tpu_custom_call.1} parent=1 // loop_footer_branch
      %11 = sbr.rel target = $region3
    $region8: #{tpu_custom_call.1} parent=1 // loop_exit
      _
    %394 = vsyncpa [#allocation3], 1
    %s395 = scalar_lea.sflag [#allocation3], 1
    %396 = vsyncpa %s395, 1

</llo_original>
